<compile_context>
chip_gen: v5e
topology: v5e:2x2
jax: 0.10.0
libtpu: 0.0.40
codegen_flags: <defaults>
</compile_context>

<pallas_src>
import functools

import jax
import jax.numpy as jnp
from jax.experimental import pallas as pl
from jax.experimental.pallas import tpu as pltpu

LANE = 128
_SINGLE_CALL_MAX_B = 256   # up to this many rows: one whole-array invocation, no grid
_BATCH_TILE = 256          # rows per grid step in the batch-tiled path


def _round_up(n, m):
    return ((n + m - 1) // m) * m


def prepare_params(w1, b1, w2, b2):
    """One-time parameter preparation: pad to lane-dense (128-multiple) shapes, cast
    weights to bf16. Call ONCE at init time and reuse for every forward call."""
    in_dim, h_dim = w1.shape
    out_dim = w2.shape[1]
    h_pad = max(LANE, _round_up(h_dim, LANE))
    n_pad = max(LANE, _round_up(out_dim, LANE))

    w1p = jnp.pad(w1, ((0, 0), (0, h_pad - h_dim))).astype(jnp.bfloat16)
    b1p = jnp.pad(b1.astype(jnp.float32).reshape(1, -1), ((0, 0), (0, h_pad - h_dim)))
    w2p = jnp.pad(w2, ((0, h_pad - h_dim), (0, n_pad - out_dim))).astype(jnp.bfloat16)
    b2p = jnp.pad(b2.astype(jnp.float32).reshape(1, -1), ((0, 0), (0, n_pad - out_dim)))
    return dict(w1=w1p, b1=b1p, w2=w2p, b2=b2p, out_dim=out_dim)


def _two_layers_kernel(x_ref, w1_ref, b1_ref, w2_ref, b2_ref, o_ref, *, out_dim):
    # x: (TB, in_dim) f32; w1: (in_dim, Hp) bf16; b1: (1, Hp) f32;
    # w2: (Hp, Np) bf16;  b2: (1, Np) f32;       o: (TB, Np) f32.
    x = x_ref[...]

    # ln1 + ReLU  (bf16 MXU operands cast in-kernel, f32 accumulate/elementwise)
    h = jnp.dot(x.astype(jnp.bfloat16), w1_ref[...],
                preferred_element_type=jnp.float32) + b1_ref[...]
    h = jnp.maximum(h, 0.0)

    # ln2 + ReLU  (zero-padded hidden columns stay exactly 0 → no effect on this matmul)
    y = jnp.dot(h.astype(jnp.bfloat16), w2_ref[...],
                preferred_element_type=jnp.float32) + b2_ref[...]
    y = jnp.maximum(y, 0.0)

    # Dropout(p=0.5) is identity in eval mode; the subsequent ReLU of an already
    # non-negative tensor is a mathematical no-op and is omitted.
    # TODO(synk): training-mode dropout needs pltpu.prng_seed + pltpu.prng_random_bits
    #             (per-tile seed) plus a 1/(1-p) rescale.

    # Mask padded output lanes so log-softmax normalizes over the real out_dim only
    # (safe: real lanes are >= 0 after ReLU, so the row max comes from real lanes).
    lane = jax.lax.broadcasted_iota(jnp.int32, y.shape, dimension=1)
    y = jnp.where(lane < out_dim, y, jnp.full_like(y, -1e30))

    # Numerically stable log-softmax over the last dim.
    m = jnp.max(y, axis=-1, keepdims=True)
    s = y - m
    lse = jnp.log(jnp.sum(jnp.exp(s), axis=-1, keepdims=True))
    o_ref[...] = s - lse


@functools.partial(jax.jit, static_argnames=("out_dim", "slice_logits"))
def _forward_impl(x, w1p, b1p, w2p, b2p, *, out_dim, slice_logits):
    B, in_dim = x.shape
    h_pad = w1p.shape[1]
    n_pad = w2p.shape[1]

    kernel = functools.partial(_two_layers_kernel, out_dim=out_dim)
    cost = pl.CostEstimate(
        flops=2 * B * (in_dim * h_pad + h_pad * n_pad),
        transcendentals=B * (n_pad + 1),
        bytes_accessed=(x.size * 4 + w1p.size * 2 + b1p.size * 4
                        + w2p.size * 2 + b2p.size * 4 + B * n_pad * 4),
    )

    if B <= _SINGLE_CALL_MAX_B:
        # Small batch: single invocation, whole-array VMEM refs, no grid machinery.
        vmem = pl.BlockSpec(memory_space=pltpu.MemorySpace.VMEM)
        out = pl.pallas_call(
            kernel,
            out_shape=jax.ShapeDtypeStruct((B, n_pad), jnp.float32),
            in_specs=[vmem, vmem, vmem, vmem, vmem],
            out_specs=vmem,
            cost_estimate=cost,
        )(x, w1p, b1p, w2p, b2p)
    else:
        # Large batch: stream x/out tiles over a parallel batch grid while the
        # (small) weights stay VMEM-resident across steps.
        TB = _BATCH_TILE
        Bp = _round_up(B, TB)
        if Bp != B:
            x = jnp.pad(x, ((0, Bp - B), (0, 0)))
        out = pl.pallas_call(
            kernel,
            out_shape=jax.ShapeDtypeStruct((Bp, n_pad), jnp.float32),
            grid_spec=pltpu.PrefetchScalarGridSpec(
                num_scalar_prefetch=0,
                grid=(Bp // TB,),
                in_specs=[
                    pl.BlockSpec((TB, in_dim), lambda i: (i, 0)),
                    pl.BlockSpec((in_dim, h_pad), lambda i: (0, 0)),  # resident
                    pl.BlockSpec((1, h_pad), lambda i: (0, 0)),       # resident
                    pl.BlockSpec((h_pad, n_pad), lambda i: (0, 0)),   # resident
                    pl.BlockSpec((1, n_pad), lambda i: (0, 0)),       # resident
                ],
                out_specs=pl.BlockSpec((TB, n_pad), lambda i: (i, 0)),
            ),
            compiler_params=pltpu.CompilerParams(
                dimension_semantics=("parallel",),   # shards batch tiles across TCs on v7x
                vmem_limit_bytes=32 << 20,           # safe on v7x's 64 MiB VMEM
            ),
            cost_estimate=cost,
        )(x, w1p, b1p, w2p, b2p)
        out = out[:B]

    if slice_logits:
        out = out[:, :out_dim]
    return out


def two_layers_forward(x, params, *, slice_logits=False):
    """x: (B, in_dim) f32; params from prepare_params(). By default returns the
    lane-dense padded (B, 128) log-prob buffer (slice deferred to the consumer)."""
    return _forward_impl(x, params["w1"], params["b1"], params["w2"], params["b2"],
                         out_dim=params["out_dim"], slice_logits=slice_logits)


if __name__ == "__main__":
    # Small shapes implied by the module: in_dim=32, h_dim=64, out_dim=16, batch=8.
    B, in_dim, h_dim, out_dim = 8, 32, 64, 16

    key = jax.random.PRNGKey(0)
    k_x, k_w1, k_b1, k_w2, k_b2 = jax.random.split(key, 5)

    x = jax.random.normal(k_x, (B, in_dim), dtype=jnp.float32)

    # Deterministic parameter init mimicking nn.Linear's U(-1/sqrt(fan_in), 1/sqrt(fan_in)).
    lim1 = 1.0 / (in_dim ** 0.5)
    lim2 = 1.0 / (h_dim ** 0.5)
    w1 = jax.random.uniform(k_w1, (in_dim, h_dim), jnp.float32, -lim1, lim1)   # pre-transposed
    b1 = jax.random.uniform(k_b1, (1, h_dim), jnp.float32, -lim1, lim1)
    w2 = jax.random.uniform(k_w2, (h_dim, out_dim), jnp.float32, -lim2, lim2)  # pre-transposed
    b2 = jax.random.uniform(k_b2, (1, out_dim), jnp.float32, -lim2, lim2)

    # One-time parameter preparation (hoisted out of the per-call path).
    params = prepare_params(w1, b1, w2, b2)

    # --- Small-batch path (single invocation, no grid) -------------------------------
    out_padded = jax.block_until_ready(two_layers_forward(x, params))
    assert out_padded.shape == (B, LANE)
    out = out_padded[:, :out_dim]   # the "consumer" slices the real logits

    # Sanity 1: log-softmax rows (exp-)sum to ~1 over the real out_dim lanes.
    row_sums = jnp.exp(out).sum(axis=-1)
    assert jnp.allclose(row_sums, jnp.ones_like(row_sums), atol=1e-5)

    # Sanity 2: match a pure-JAX f32 reference of the module's eval-mode forward
    # (loose tolerance because the kernel uses bf16 MXU operands).
    h_ref = jnp.maximum(x @ w1 + b1, 0.0)
    y_ref = jnp.maximum(h_ref @ w2 + b2, 0.0)
    ref = jax.nn.log_softmax(y_ref, axis=-1)
    assert jnp.allclose(out, ref, atol=1e-1), float(jnp.max(jnp.abs(out - ref)))

    # --- Large-batch path (batch-tiled grid, weights resident) -----------------------
    Bbig = 512
    x_big = jax.random.normal(jax.random.PRNGKey(1), (Bbig, in_dim), dtype=jnp.float32)
    out_big = jax.block_until_ready(two_layers_forward(x_big, params, slice_logits=True))
    assert out_big.shape == (Bbig, out_dim)
    h_ref = jnp.maximum(x_big @ w1 + b1, 0.0)
    y_ref = jnp.maximum(h_ref @ w2 + b2, 0.0)
    ref_big = jax.nn.log_softmax(y_ref, axis=-1)
    assert jnp.allclose(out_big, ref_big, atol=1e-1), float(jnp.max(jnp.abs(out_big - ref_big)))

    print("KERNEL_OK")
</pallas_src>

<mosaic_0001>
module attributes {stable_mosaic.version = 11 : i64} {
  func.func @_two_layers_kernel(%arg0: memref<8x32xf32, #tpu.memory_space<vmem>>, %arg1: memref<32x128xbf16, #tpu.memory_space<vmem>>, %arg2: memref<1x128xf32, #tpu.memory_space<vmem>>, %arg3: memref<128x128xbf16, #tpu.memory_space<vmem>>, %arg4: memref<1x128xf32, #tpu.memory_space<vmem>>, %arg5: memref<8x128xf32, #tpu.memory_space<vmem>>) attributes {dimension_semantics = [], scalar_prefetch = 0 : i64, scratch_operands = 0 : i64, tpu.core_type = #tpu.core_type<tc>} {
    %c0 = arith.constant 0 : index
    %c0_0 = arith.constant 0 : index
    %0 = vector.load %arg0[%c0, %c0_0] : memref<8x32xf32, #tpu.memory_space<vmem>>, vector<8x32xf32>
    %1 = arith.truncf %0 : vector<8x32xf32> to vector<8x32xbf16>
    %c0_1 = arith.constant 0 : index
    %c0_2 = arith.constant 0 : index
    %2 = vector.load %arg1[%c0_1, %c0_2] : memref<32x128xbf16, #tpu.memory_space<vmem>>, vector<32x128xbf16>
    %cst = arith.constant dense<0.000000e+00> : vector<8x128xf32>
    %3 = tpu.matmul %1, %2, %cst {dimension_numbers = #tpu.dot_dimension_numbers<[1], [0], [0], [1], [0, 0, 1, 1], [], []>} : vector<8x32xbf16>, vector<32x128xbf16>, vector<8x128xf32> -> vector<8x128xf32>
    %c0_3 = arith.constant 0 : index
    %c0_4 = arith.constant 0 : index
    %4 = vector.load %arg2[%c0_3, %c0_4] : memref<1x128xf32, #tpu.memory_space<vmem>>, vector<1x128xf32>
    %5 = vector.broadcast %4 : vector<1x128xf32> to vector<8x128xf32>
    %6 = arith.addf %3, %5 : vector<8x128xf32>
    %cst_5 = arith.constant 0.000000e+00 : f32
    %7 = vector.broadcast %cst_5 : f32 to vector<8x128xf32>
    %8 = arith.maximumf %6, %7 : vector<8x128xf32>
    %9 = arith.truncf %8 : vector<8x128xf32> to vector<8x128xbf16>
    %c0_6 = arith.constant 0 : index
    %c0_7 = arith.constant 0 : index
    %10 = vector.load %arg3[%c0_6, %c0_7] : memref<128x128xbf16, #tpu.memory_space<vmem>>, vector<128x128xbf16>
    %cst_8 = arith.constant dense<0.000000e+00> : vector<8x128xf32>
    %11 = tpu.matmul %9, %10, %cst_8 {dimension_numbers = #tpu.dot_dimension_numbers<[1], [0], [0], [1], [0, 0, 1, 1], [], []>} : vector<8x128xbf16>, vector<128x128xbf16>, vector<8x128xf32> -> vector<8x128xf32>
    %c0_9 = arith.constant 0 : index
    %c0_10 = arith.constant 0 : index
    %12 = vector.load %arg4[%c0_9, %c0_10] : memref<1x128xf32, #tpu.memory_space<vmem>>, vector<1x128xf32>
    %13 = vector.broadcast %12 : vector<1x128xf32> to vector<8x128xf32>
    %14 = arith.addf %11, %13 : vector<8x128xf32>
    %cst_11 = arith.constant 0.000000e+00 : f32
    %15 = vector.broadcast %cst_11 : f32 to vector<8x128xf32>
    %16 = arith.maximumf %14, %15 : vector<8x128xf32>
    %17 = tpu.iota {dimensions = array<i32: 1>} : vector<8x128xi32>
    %c16_i32 = arith.constant 16 : i32
    %18 = vector.broadcast %c16_i32 : i32 to vector<8x128xi32>
    %19 = arith.cmpi slt, %17, %18 : vector<8x128xi32>
    %cst_12 = arith.constant -1.000000e+30 : f32
    %20 = vector.broadcast %cst_12 : f32 to vector<8x128xf32>
    %21 = arith.select %19, %16, %20 : vector<8x128xi1>, vector<8x128xf32>
    %cst_13 = arith.constant dense<0xFF800000> : vector<8xf32>
    %22 = vector.multi_reduction <maximumf>, %21, %cst_13 [1] : vector<8x128xf32> to vector<8xf32>
    %23 = vector.shape_cast %22 : vector<8xf32> to vector<8x1xf32>
    %24 = vector.broadcast %23 : vector<8x1xf32> to vector<8x128xf32>
    %25 = arith.subf %21, %24 : vector<8x128xf32>
    %26 = math.exp %25 : vector<8x128xf32>
    %cst_14 = arith.constant dense<0.000000e+00> : vector<8xf32>
    %27 = vector.multi_reduction <add>, %26, %cst_14 [1] : vector<8x128xf32> to vector<8xf32>
    %28 = vector.shape_cast %27 : vector<8xf32> to vector<8x1xf32>
    %29 = math.log %28 : vector<8x1xf32>
    %30 = vector.broadcast %29 : vector<8x1xf32> to vector<8x128xf32>
    %31 = arith.subf %25, %30 : vector<8x128xf32>
    %c0_15 = arith.constant 0 : index
    %c0_16 = arith.constant 0 : index
    %32 = vector.load %arg5[%c0_15, %c0_16] : memref<8x128xf32, #tpu.memory_space<vmem>>, vector<8x128xf32>
    tpu.vector_store %arg5[%c0_15, %c0_16], %31 {strides = array<i32>} : memref<8x128xf32, #tpu.memory_space<vmem>>, vector<8x128xf32>,
    return
  }
}

</mosaic_0001>

<llo_original>
// kernel: _forward_impl.1
$region0: #{_forward_impl.1}
  #allocation0 [shape = 'u32[]', space=smem, size = 0x4, offset = 0x4, fixed_abs, tag = 'smem constant byte address 0x4 - core index']
  #allocation1 [shape = 'u32[72,128]{1,0:T(1,128)}', space=vmem, size = 0x9000, scoped, tag = 'internal scratch']
  %s0 = inlined_call_operand.hbm [shape: f32[8,32], index: 0, kind: input, shape index: {}]
  %s1 = inlined_call_operand.hbm [shape: bf16[32,128], index: 1, kind: input, shape index: {}]
  %s2 = inlined_call_operand.vmem [shape: f32[1,128], index: 2, kind: input, shape index: {}]
  %s3 = inlined_call_operand.hbm [shape: bf16[128,128], index: 3, kind: input, shape index: {}]
  %s4 = inlined_call_operand.vmem [shape: f32[1,128], index: 4, kind: input, shape index: {}]
  %s5 = inlined_call_operand.hbm [shape: f32[8,128], index: 5, kind: output, shape index: {}]
  %s6 = sld [smem:[#allocation0]]
  $region42: #{_forward_impl.1} parent=0
    _
  %s8 = ssub.s32 1, %s6
  %s9 = scalar_select 0, %s8, %s6
  $region1: #{_forward_impl.1} parent=0
    #allocation2 [shape = 'u8[4096]{0}', space=vmem, size = 0x1000, scoped, tag = 'input window, operand 0, single buffered']
    #allocation3 [shape = 's32[1]{0}', space=sflag, size = 0x4, scoped, tag = 'scoped memory for _forward_impl.1']
    #allocation4 [shape = 's32[1]{0}', space=sflag, size = 0x4, scoped, tag = 'scoped memory for _forward_impl.1']
    #allocation5 [shape = 'u8[8192]{0}', space=vmem, size = 0x2000, scoped, tag = 'input window, operand 1, single buffered']
    #allocation6 [shape = 's32[1]{0}', space=sflag, size = 0x4, scoped, tag = 'scoped memory for _forward_impl.1']
    #allocation7 [shape = 'u8[32768]{0}', space=vmem, size = 0x8000, scoped, tag = 'input window, operand 3, single buffered']
    #allocation8 [shape = 'u8[4096]{0}', space=vmem, size = 0x1000, scoped, tag = 'output window, operand 0, single buffered']
    %10 = vsyncpa [#allocation3], 0
    %11 = vsyncpa [#allocation6], 0
    %12 = vsyncpa [#allocation4], 0
    // Predicated region
    $region2: #{_forward_impl.1} parent=1 // pred_check
      _
    $region3: #{_forward_impl.1} parent=1 // pred_check_branch
      %14 = sbr.rel (0) target = $region5
    $region4: #{_forward_impl.1} parent=1 // pred_region
      %16 = vsyncadd [#allocation3], 0
      %s18 = sshll.u32 %s0, 4
      %s19 = int_to_ptr.hbm [resolvable:$true] %s18
      %s20 = sshll.u32 [#allocation2], 4
      %s21 = int_to_ptr.vmem [resolvable:$true] %s20
      %23 = dma.hbm_to_vmem [thread:$0]  %s19, 128, %s21, [#allocation3]
    $region5: #{_forward_impl.1} parent=1 // pred_fallthru
      _
    // Predicated region
    $region6: #{_forward_impl.1} parent=1 // pred_check
      _
    $region7: #{_forward_impl.1} parent=1 // pred_check_branch
      %25 = sbr.rel (0) target = $region9
    $region8: #{_forward_impl.1} parent=1 // pred_region
      %27 = vsyncadd [#allocation6], 0
      %s28 = sshll.u32 %s1, 4
      %s29 = int_to_ptr.hbm [resolvable:$true] %s28
      %s30 = sshll.u32 [#allocation5], 4
      %s31 = int_to_ptr.vmem [resolvable:$true] %s30
      %36 = dma.hbm_to_vmem [thread:$0]  %s29, 256, %s31, [#allocation6], 64, 64, 4
    $region9: #{_forward_impl.1} parent=1 // pred_fallthru
      _
    // Predicated region
    $region10: #{_forward_impl.1} parent=1 // pred_check
      _
    $region11: #{_forward_impl.1} parent=1 // pred_check_branch
      %38 = sbr.rel (0) target = $region13
    $region12: #{_forward_impl.1} parent=1 // pred_region
      _
    $region13: #{_forward_impl.1} parent=1 // pred_fallthru
      _
    // Predicated region
    $region14: #{_forward_impl.1} parent=1 // pred_check
      _
    $region15: #{_forward_impl.1} parent=1 // pred_check_branch
      %40 = sbr.rel (0) target = $region17
    $region16: #{_forward_impl.1} parent=1 // pred_region
      %42 = vsyncadd [#allocation6], 0
      %s43 = sshll.u32 %s3, 4
      %s44 = int_to_ptr.hbm [resolvable:$true] %s43
      %s45 = sshll.u32 [#allocation7], 4
      %s46 = int_to_ptr.vmem [resolvable:$true] %s45
      %51 = dma.hbm_to_vmem [thread:$0]  %s44, 1024, %s46, [#allocation6], 64, 64, 4
    $region17: #{_forward_impl.1} parent=1 // pred_fallthru
      _
    // Predicated region
    $region18: #{_forward_impl.1} parent=1 // pred_check
      _
    $region19: #{_forward_impl.1} parent=1 // pred_check_branch
      %53 = sbr.rel (0) target = $region21
    $region20: #{_forward_impl.1} parent=1 // pred_region
      _
    $region21: #{_forward_impl.1} parent=1 // pred_fallthru
      _
    // Predicated region
    $region22: #{_forward_impl.1} parent=1 // pred_check
      _
    $region23: #{_forward_impl.1} parent=1 // pred_check_branch
      %55 = sbr.rel (0) target = $region25
    $region24: #{_forward_impl.1} parent=1 // pred_region
      %57 = dma.done [#allocation3], 128
    $region25: #{_forward_impl.1} parent=1 // pred_fallthru
      _
    // Predicated region
    $region26: #{_forward_impl.1} parent=1 // pred_check
      _
    $region27: #{_forward_impl.1} parent=1 // pred_check_branch
      %59 = sbr.rel (0) target = $region29
    $region28: #{_forward_impl.1} parent=1 // pred_region
      %61 = dma.done [#allocation6], 256
    $region29: #{_forward_impl.1} parent=1 // pred_fallthru
      _
    // Predicated region
    $region30: #{_forward_impl.1} parent=1 // pred_check
      _
    $region31: #{_forward_impl.1} parent=1 // pred_check_branch
      %63 = sbr.rel (0) target = $region33
    $region32: #{_forward_impl.1} parent=1 // pred_region
      %65 = dma.done [#allocation6], 1024
    $region33: #{_forward_impl.1} parent=1 // pred_fallthru
      _
    %v67 = vld [vmem:[#allocation2] sm:$0xff]
    %v68 = vpack.c.bf16 %v67, %v67
    %v69 = vld [vmem:[#allocation5] sm:$0xf]
    %v70 = vld [vmem:[#allocation5 + $0x4] sm:$0xf]
    %v71 = vld [vmem:[#allocation5 + $0x8] sm:$0xf]
    %v72 = vld [vmem:[#allocation5 + $0xc] sm:$0xf]
    %v73 = vld [vmem:[%s2] sm:$0x1]
    %v75 = vperm.slane %v73, 0
    %v81 = vunpack.c.l.b16 %v69
    %v82 = vunpack.c.l.b16 %v70
    %v83 = vunpack.c.l.b16 %v71
    %v84 = vunpack.c.l.b16 %v72
    %v85 = vpack.c.b16 %v82, %v81
    %v86 = vpack.c.b16 %v84, %v83
    %vm89 = vcmask 261120
    %v91 = vsel %vm89, %v68, 0
    %93 = vmatpush.bf16.msra.mxu0 0
    %94 = vmatpush.bf16.msra.mxu0 0
    %95 = vmatpush.bf16.msra.mxu0 0
    %96 = vmatpush.bf16.msra.mxu0 0
    %97 = vmatpush.bf16.msra.mxu0 0
    %98 = vmatpush.bf16.msra.mxu0 0
    %99 = vmatpush.bf16.msra.mxu0 %v86
    %100 = vmatpush.bf16.msra.mxu0 %v85
    %101 = vmatmul.bf16.gmra.mxu0 %v91
    %v102 = vpop.f32.mrf.mxu0
    %v103 = vadd.f32 %v75, %v102
    %v104 = vpop.f32.mrf.mxu0
    %105 = vdwg.mxu0
    %v106 = vmax.f32 %v103, 0.0
    %v107 = vpack.c.bf16 %v106, %v106
    %v108 = vld [vmem:[#allocation7] sm:$0xf]
    %v109 = vld [vmem:[#allocation7 + $0x4] sm:$0xf]
    %v110 = vld [vmem:[#allocation7 + $0x8] sm:$0xf]
    %v111 = vld [vmem:[#allocation7 + $0xc] sm:$0xf]
    %v112 = vld [vmem:[#allocation7 + $0x10] sm:$0xf]
    %v113 = vld [vmem:[#allocation7 + $0x14] sm:$0xf]
    %v114 = vld [vmem:[#allocation7 + $0x18] sm:$0xf]
    %v115 = vld [vmem:[#allocation7 + $0x1c] sm:$0xf]
    %v116 = vld [vmem:[#allocation7 + $0x20] sm:$0xf]
    %v117 = vld [vmem:[#allocation7 + $0x24] sm:$0xf]
    %v118 = vld [vmem:[#allocation7 + $0x28] sm:$0xf]
    %v119 = vld [vmem:[#allocation7 + $0x2c] sm:$0xf]
    %v120 = vld [vmem:[#allocation7 + $0x30] sm:$0xf]
    %v121 = vld [vmem:[#allocation7 + $0x34] sm:$0xf]
    %v122 = vld [vmem:[#allocation7 + $0x38] sm:$0xf]
    %v123 = vld [vmem:[#allocation7 + $0x3c] sm:$0xf]
    %v124 = vld [vmem:[%s4] sm:$0x1]
    %v126 = vperm.slane %v124, 0
    %v144 = vunpack.c.l.b16 %v108
    %v145 = vunpack.c.l.b16 %v109
    %v146 = vunpack.c.l.b16 %v110
    %v147 = vunpack.c.l.b16 %v111
    %v148 = vunpack.c.l.b16 %v112
    %v149 = vunpack.c.l.b16 %v113
    %v150 = vunpack.c.l.b16 %v114
    %v151 = vunpack.c.l.b16 %v115
    %v152 = vunpack.c.l.b16 %v116
    %v153 = vunpack.c.l.b16 %v117
    %v154 = vunpack.c.l.b16 %v118
    %v155 = vunpack.c.l.b16 %v119
    %v156 = vunpack.c.l.b16 %v120
    %v157 = vunpack.c.l.b16 %v121
    %v158 = vunpack.c.l.b16 %v122
    %v159 = vunpack.c.l.b16 %v123
    %v160 = vpack.c.b16 %v145, %v144
    %v161 = vpack.c.b16 %v147, %v146
    %v162 = vpack.c.b16 %v149, %v148
    %v163 = vpack.c.b16 %v151, %v150
    %v164 = vpack.c.b16 %v153, %v152
    %v165 = vpack.c.b16 %v155, %v154
    %v166 = vpack.c.b16 %v157, %v156
    %v167 = vpack.c.b16 %v159, %v158
    %176 = vmatpush.bf16.msra.mxu0 %v167
    %177 = vmatpush.bf16.msra.mxu0 %v166
    %178 = vmatpush.bf16.msra.mxu0 %v165
    %179 = vmatpush.bf16.msra.mxu0 %v164
    %180 = vmatpush.bf16.msra.mxu0 %v163
    %181 = vmatpush.bf16.msra.mxu0 %v162
    %182 = vmatpush.bf16.msra.mxu0 %v161
    %183 = vmatpush.bf16.msra.mxu0 %v160
    %184 = vmatmul.bf16.gmra.mxu0 %v107
    %v185 = vpop.f32.mrf.mxu0
    %v186 = vadd.f32 %v126, %v185
    %v187 = vpop.f32.mrf.mxu0
    %188 = vdwg.mxu0
    %v189 = vmax.f32 %v186, 0.0
    %v190 = vlaneseq
    %v191 = vand.u32 %v190, 127
    %vm192 = vcmp.lt.s32.totalorder %v191, 16
    %v193 = vsel %vm192, %v189, -1e+30
    %194 = vmax.xlane.f32.xlu0 %v193
    %v195 = vpop.xlane.xlu0 %194
    %v196 = vsub.f32 %v193, %v195
    %v197 = vmul.f32 %v196, 1.442695
    %v198 = vpow.pop %v197
    %199 = vadd.xlane.f32.xlu0 %v198
    %v200 = vpop.xlane.xlu0 %199
    %v201 = vlog2.pop %v200
    %v202 = vmul.f32 %v201, 0.6931472
    %v203 = vsub.f32 %v196, %v202
    %204 = vst [vmem:[#allocation8] sm:$0xff] %v203
    // Predicated region
    $region34: #{_forward_impl.1} parent=1 // pred_check
      _
    $region35: #{_forward_impl.1} parent=1 // pred_check_branch
      %206 = sbr.rel (0) target = $region37
    $region36: #{_forward_impl.1} parent=1 // pred_region
      %208 = vsyncadd [#allocation4], 0
      %s210 = sshll.u32 [#allocation8], 4
      %s211 = int_to_ptr.vmem [resolvable:$true] %s210
      %s212 = sshll.u32 %s5, 4
      %s213 = int_to_ptr.hbm [resolvable:$true] %s212
      %215 = dma.vmem_to_hbm [thread:$0]  %s211, 128, %s213, [#allocation4]
    $region37: #{_forward_impl.1} parent=1 // pred_fallthru
      _
    // Predicated region
    $region38: #{_forward_impl.1} parent=1 // pred_check
      _
    $region39: #{_forward_impl.1} parent=1 // pred_check_branch
      %217 = sbr.rel (0) target = $region41
    $region40: #{_forward_impl.1} parent=1 // pred_region
      %219 = dma.done [#allocation4], 128
    $region41: #{_forward_impl.1} parent=1 // pred_fallthru
      _
    %220 = vsyncpa [#allocation3], 1
    %221 = vsyncpa [#allocation6], 1
    %222 = vsyncpa [#allocation4], 1

</llo_original>
